<compile_context>
chip_gen: v6e
topology: v6e:2x2x1
jax: 0.10.0
libtpu: 0.0.40
codegen_flags: <defaults>
</compile_context>

<pallas_src>
import jax
import jax.numpy as jnp
from jax.experimental import pallas as pl
from jax.experimental.pallas import tpu as pltpu

EPS = 1e-5          # PyTorch BatchNorm2d default eps
VPAD = 128          # lane-dense output width; real value_size columns are [:, :V]
_NEG_BIG = -1e30    # bias for padded softmax columns (exp -> exactly 0 in f32)
_ALIGN = 256        # batch-tile alignment: multiple of 128 (fills the MXU M dim,
                    # incl. v5e's 4x128x128) and of 16 (bf16 sublane packing)
_MAX_BLOCK_B = 2048


# ------------------------------- kernel ------------------------------------ #

def _value_head_kernel(x_ref, st_ref, w1_ref, b1_ref, w2_ref, b2_ref, o_ref):
    """Fused ValueHead forward.

    x_ref : (TB, C*P)   flattened NCHW input tile (f32 or bf16 stream)
    st_ref: (2, C*P)    row 0 = BN1 eval scale, row 1 = BN1 eval shift (f32)
    w1_ref: (C*P, U)    dense1 weight with 1x1-conv and BN2 folded in
    b1_ref: (1, U)      folded dense1 bias (f32)
    w2_ref: (U, VPAD)   dense2 weight, zero-padded to 128 lanes
    b2_ref: (1, VPAD)   dense2 bias, padded columns = -1e30
    o_ref : (TB, VPAD)  softmax probabilities (padded columns are exactly 0)
    """
    # BN1 (eval affine) + ReLU in f32 on the VPU (v5e-safe even with bf16 x).
    x = x_ref[...].astype(jnp.float32)
    st = st_ref[...]
    h = jnp.maximum(x * st[0:1, :] + st[1:2, :], 0.0)
    # dense1 (conv + BN2 folded in) + ReLU; MXU in the weights' dtype, f32 acc.
    z = jnp.dot(h.astype(w1_ref.dtype), w1_ref[...],
                preferred_element_type=jnp.float32) + b1_ref[...]
    z = jnp.maximum(z, 0.0)
    # dense2 + softmax(dim=1) over the lane-padded logits.
    logits = jnp.dot(z.astype(w2_ref.dtype), w2_ref[...],
                     preferred_element_type=jnp.float32) + b2_ref[...]
    m = jnp.max(logits, axis=1, keepdims=True)
    e = jnp.exp(logits - m)
    denom = jnp.sum(e, axis=1, keepdims=True)
    o_ref[...] = e * pl.reciprocal(denom, approx=False)  # exact: keeps 1e-5 tol (f32 path)


# --------------------------- param preparation ------------------------------ #

def fold_params(params, state_plane_size, compute_dtype=jnp.float32):
    """One-time prep: fold eval-mode BN1/BN2 and the 1x1 conv into affine terms
    and the dense1 weights; pad dense2 to a lane-dense 128-wide output.
    `compute_dtype` (f32 or bf16) is used for the matmul operands and the
    streamed x; all biases / affine terms stay f32."""
    P = state_plane_size
    C = params["bn1_gamma"].shape[0]
    M = params["conv_w"].shape[0]
    U = params["w1"].shape[0]
    V = params["w2"].shape[0]

    # BN1 eval affine, expanded to one scale/shift per flattened column c*P+p.
    s1 = params["bn1_gamma"] / jnp.sqrt(params["bn1_var"] + EPS)       # (C,)
    t1 = params["bn1_beta"] - params["bn1_mean"] * s1                  # (C,)
    st = jnp.stack([jnp.repeat(s1, P), jnp.repeat(t1, P)])             # (2, C*P)

    # Fold conv(1x1, no bias) + BN2(eval) into dense1 (purely linear chain).
    s2 = params["bn2_gamma"] / jnp.sqrt(params["bn2_var"] + EPS)       # (M,)
    t2 = params["bn2_beta"] - params["bn2_mean"] * s2                  # (M,)
    wc = params["conv_w"].reshape(M, C)                                # (M, C)
    w1 = params["w1"].reshape(U, M, P)                                 # (U, M, P)
    # W1'[u, c*P+p] = sum_m W1[u, m*P+p] * s2[m] * wc[m, c]
    w1_folded = jnp.einsum("ump,m,mc->ucp", w1, s2, wc).reshape(U, C * P)
    # b1'[u] = b1[u] + sum_{m,p} W1[u, m*P+p] * t2[m]
    b1_folded = params["b1"] + jnp.einsum("ump,m->u", w1, t2)

    # dense2: pre-transpose once and lane-pad to VPAD output columns.
    w2t = jnp.zeros((U, VPAD), jnp.float32).at[:, :V].set(params["w2"].T)
    b2 = jnp.full((VPAD,), _NEG_BIG, jnp.float32).at[:V].set(params["b2"])

    return {
        "st": st.astype(jnp.float32),                   # (2, C*P)
        "w1t": w1_folded.T.astype(compute_dtype),       # (C*P, U), pre-transposed once
        "b1": b1_folded[None, :].astype(jnp.float32),   # (1, U)
        "w2t": w2t.astype(compute_dtype),               # (U, VPAD)
        "b2": b2[None, :],                              # (1, VPAD), f32
        "x_dtype": compute_dtype,
        "value_size": V,
    }


# ---------------------------- launch planning ------------------------------- #

def _vmem_budget_bytes():
    """Conservative per-TensorCore scoped-VMEM budget with headroom.
    v5e/v6e have 128 MiB physical VMEM, v7x 64 MiB per TC; default scoped
    limits are 16/32/32 MiB.  Query when available, else assume the v7x floor."""
    try:
        phys = int(pltpu.get_tpu_info().vmem_capacity_bytes)
    except Exception:
        phys = 64 << 20
    return int(min(phys // 2, 48 << 20))


def _plan_launch(B, CP, U, vpad, x_itemsize, w_itemsize):
    """Pick (block_b, padded_B, vmem_limit_bytes) from a VMEM budget instead of
    a divisor heuristic; prefer padding B over shrinking the tile."""
    budget = _vmem_budget_bytes()

    def vmem_tile(rows, cols, itemsize):        # round up to (8,128) VMEM tiling
        return ((rows + 7) // 8) * 8 * ((cols + 127) // 128) * 128 * itemsize

    # Grid-invariant operands are single-buffered (pl.Buffered(1)).
    resident = (vmem_tile(CP, U, w_itemsize) + vmem_tile(U, vpad, w_itemsize)
                + vmem_tile(2, CP, 4) + vmem_tile(1, U, 4) + vmem_tile(1, vpad, 4))
    # Streamed per-row cost: 3 x-buffers (Buffered(3)) + double-buffered f32 out.
    per_row = 3 * CP * x_itemsize + 2 * vpad * 4

    if B <= _ALIGN:
        block_b = B                              # single full block (small batch)
    else:
        avail = max(budget - 2 * resident, _ALIGN * per_row)
        fit = max(_ALIGN, (avail // per_row) // _ALIGN * _ALIGN)
        # Keep >= 2 grid steps so a v7x chip can shard the grid over both TCs.
        two_step_cap = max(_ALIGN, (B // (2 * _ALIGN)) * _ALIGN)
        block_b = int(min(fit, two_step_cap, _MAX_BLOCK_B))

    b_pad = -(-B // block_b) * block_b
    need = 2 * resident + block_b * per_row + (2 << 20)
    vmem_limit = int(min(budget, max(need, 32 << 20)))
    return block_b, b_pad, vmem_limit


# ------------------------------ forward ------------------------------------- #

def value_head_forward(folded, x):
    """x: (B, C, H, W) float32 (NCHW, like PyTorch).  `folded` = fold_params(...)."""
    B = x.shape[0]
    CP, U = folded["w1t"].shape
    vpad = folded["w2t"].shape[1]
    V = folded["value_size"]

    # NCHW -> (B, C*H*W): identical memory order to PyTorch's .view flattening,
    # so no transpose is needed anywhere.  Stream x in the compute dtype
    # (bf16 halves the dominant HBM bytes of this mem-bound kernel).
    xf = x.reshape(B, CP).astype(folded["x_dtype"])

    x_isz = jnp.dtype(folded["x_dtype"]).itemsize
    w_isz = jnp.dtype(folded["w1t"].dtype).itemsize
    block_b, b_pad, vmem_limit = _plan_launch(B, CP, U, vpad, x_isz, w_isz)
    if b_pad != B:
        xf = jnp.pad(xf, ((0, b_pad - B), (0, 0)))   # pad batch; padded rows sliced off
    grid = (b_pad // block_b,)

    fixed = lambda i: (0, 0)   # grid-invariant operands stay resident across steps

    def _specs(use_pipeline_mode):
        def spec(shape, imap, bufs=None):
            if use_pipeline_mode and bufs is not None:
                return pl.BlockSpec(shape, imap, pipeline_mode=pl.Buffered(bufs))
            return pl.BlockSpec(shape, imap)
        in_specs = [
            spec((block_b, CP), lambda i: (i, 0), bufs=3),  # x: only streamed operand
            spec((2, CP), fixed, bufs=1),                   # BN1 scale/shift
            spec((CP, U), fixed, bufs=1),                   # folded dense1 weight
            spec((1, U), fixed, bufs=1),                    # folded dense1 bias
            spec((U, vpad), fixed, bufs=1),                 # padded dense2 weight
            spec((1, vpad), fixed, bufs=1),                 # padded dense2 bias
        ]
        out_spec = pl.BlockSpec((block_b, vpad), lambda i: (i, 0))
        return in_specs, out_spec

    def _run(use_opt):
        in_specs, out_spec = _specs(use_opt)
        extra = {}
        if use_opt:
            extra["cost_estimate"] = pl.CostEstimate(
                flops=int(2 * b_pad * CP * U + 2 * b_pad * U * vpad + 4 * b_pad * CP),
                transcendentals=int(b_pad * vpad),
                bytes_accessed=int(b_pad * CP * x_isz
                                   + CP * U * w_isz + U * vpad * w_isz
                                   + b_pad * vpad * 4),
            )
        return pl.pallas_call(
            _value_head_kernel,
            out_shape=jax.ShapeDtypeStruct((b_pad, vpad), jnp.float32),
            grid=grid,
            in_specs=in_specs,
            out_specs=out_spec,
            compiler_params=pltpu.CompilerParams(
                dimension_semantics=("parallel",),
                vmem_limit_bytes=vmem_limit),
            **extra,
        )(xf, folded["st"], folded["w1t"], folded["b1"], folded["w2t"], folded["b2"])

    try:
        out = _run(True)
    except Exception:
        # Older Pallas without BlockSpec pipeline_mode / CostEstimate support:
        # identical kernel, default double-buffered specs.
        out = _run(False)

    return out[:B, :V]


# --------------------------- params & reference ----------------------------- #

def init_params(key, nfilters_in, state_plane_size, value_size,
                nfilters_mid=3, nunits_mid=16):
    ks = jax.random.split(key, 12)
    C, M, U, V, P = nfilters_in, nfilters_mid, nunits_mid, value_size, state_plane_size
    return {
        # value_conv.bn = BatchNorm2d(C)
        "bn1_gamma": 1.0 + 0.1 * jax.random.normal(ks[0], (C,), jnp.float32),
        "bn1_beta": 0.05 * jax.random.normal(ks[1], (C,), jnp.float32),
        "bn1_mean": 0.1 * jax.random.normal(ks[2], (C,), jnp.float32),
        "bn1_var": jax.random.uniform(ks[3], (C,), jnp.float32, 0.5, 1.5),
        # value_conv.conv = Conv2d(C, M, kernel_size=1, bias=False)
        "conv_w": 0.3 * jax.random.normal(ks[4], (M, C, 1, 1), jnp.float32),
        # value_bn = BatchNorm2d(M)
        "bn2_gamma": 1.0 + 0.1 * jax.random.normal(ks[5], (M,), jnp.float32),
        "bn2_beta": 0.05 * jax.random.normal(ks[6], (M,), jnp.float32),
        "bn2_mean": 0.1 * jax.random.normal(ks[7], (M,), jnp.float32),
        "bn2_var": jax.random.uniform(ks[8], (M,), jnp.float32, 0.5, 1.5),
        # value_dense1 = Linear(M*P, U); value_dense2 = Linear(U, V)
        "w1": 0.2 * jax.random.normal(ks[9], (U, M * P), jnp.float32),
        "b1": 0.05 * jax.random.normal(ks[10], (U,), jnp.float32),
        "w2": 0.2 * jax.random.normal(ks[11], (V, U), jnp.float32),
        "b2": jnp.linspace(-0.1, 0.1, V, dtype=jnp.float32),
    }


def reference_forward(params, x):
    """Pure-JAX mirror of the PyTorch eval-mode forward (correctness check)."""
    B, C, H, W = x.shape
    M = params["conv_w"].shape[0]

    def bn(v, g, b, mu, var):
        sh = (1, -1, 1, 1)
        return (v - mu.reshape(sh)) / jnp.sqrt(var.reshape(sh) + EPS) * g.reshape(sh) + b.reshape(sh)

    h = jnp.maximum(bn(x, params["bn1_gamma"], params["bn1_beta"],
                       params["bn1_mean"], params["bn1_var"]), 0.0)
    conv = jnp.einsum("mc,bchw->bmhw", params["conv_w"].reshape(M, C), h)
    y = bn(conv, params["bn2_gamma"], params["bn2_beta"],
           params["bn2_mean"], params["bn2_var"])
    flat = y.reshape(B, -1)
    z = jnp.maximum(flat @ params["w1"].T + params["b1"], 0.0)
    logits = z @ params["w2"].T + params["b2"]
    return jax.nn.softmax(logits, axis=1)


# --------------------------------- main -------------------------------------- #

if __name__ == "__main__":
    # ValueHead(state_plane_size=16, nfilters_in=4, value_size=3)
    B, C, H, W = 2, 4, 4, 4
    state_plane_size = H * W      # 16
    value_size = 3

    key = jax.random.PRNGKey(0)
    pkey, xkey = jax.random.split(key)
    params = init_params(pkey, C, state_plane_size, value_size)
    x = jax.random.normal(xkey, (B, C, H, W), jnp.float32)

    ref = reference_forward(params, x)

    # f32 path: exact (meets the 1e-5 check).
    folded32 = fold_params(params, state_plane_size, compute_dtype=jnp.float32)
    out32 = jax.block_until_ready(value_head_forward(folded32, x))
    assert out32.shape == (B, value_size)
    assert jnp.allclose(jnp.sum(out32, axis=1), 1.0, atol=1e-5)
    assert jnp.allclose(out32, ref, atol=1e-5, rtol=1e-5)

    # bf16 path: the perf-optimized production setting (relaxed tolerance).
    folded16 = fold_params(params, state_plane_size, compute_dtype=jnp.bfloat16)
    out16 = jax.block_until_ready(value_head_forward(folded16, x))
    assert out16.shape == (B, value_size)
    assert jnp.allclose(jnp.sum(out16, axis=1), 1.0, atol=1e-4)
    assert jnp.allclose(out16, ref, atol=2e-2, rtol=2e-2)

    print("KERNEL_OK")
</pallas_src>

<mosaic_0001>
module attributes {stable_mosaic.version = 11 : i64} {
  func.func @_value_head_kernel(%arg0: i32, %arg1: memref<2x64xf32, #tpu.memory_space<vmem>>, %arg2: memref<2x64xf32, #tpu.memory_space<vmem>>, %arg3: memref<64x16xf32, #tpu.memory_space<vmem>>, %arg4: memref<1x16xf32, #tpu.memory_space<vmem>>, %arg5: memref<16x128xf32, #tpu.memory_space<vmem>>, %arg6: memref<1x128xf32, #tpu.memory_space<vmem>>, %arg7: memref<2x128xf32, #tpu.memory_space<vmem>>) attributes {dimension_semantics = [#tpu.dimension_semantics<parallel>], iteration_bounds = array<i64: 1>, scalar_prefetch = 0 : i64, scratch_operands = 0 : i64, tpu.core_type = #tpu.core_type<tc>, window_params = [{transform_indices = @transform_0, window_bounds = array<i64: 2, 64>}, {pipeline_mode = #tpu.pipeline_mode<synchronous>, transform_indices = @transform_1, window_bounds = array<i64: 2, 64>}, {pipeline_mode = #tpu.pipeline_mode<synchronous>, transform_indices = @transform_2, window_bounds = array<i64: 64, 16>}, {pipeline_mode = #tpu.pipeline_mode<synchronous>, transform_indices = @transform_3, window_bounds = array<i64: 1, 16>}, {pipeline_mode = #tpu.pipeline_mode<synchronous>, transform_indices = @transform_4, window_bounds = array<i64: 16, 128>}, {pipeline_mode = #tpu.pipeline_mode<synchronous>, transform_indices = @transform_5, window_bounds = array<i64: 1, 128>}, {transform_indices = @transform_6, window_bounds = array<i64: 2, 128>}]} {
    %c0 = arith.constant 0 : index
    %c0_0 = arith.constant 0 : index
    %0 = vector.load %arg1[%c0, %c0_0] : memref<2x64xf32, #tpu.memory_space<vmem>>, vector<2x64xf32>
    %c0_1 = arith.constant 0 : index
    %c0_2 = arith.constant 0 : index
    %1 = vector.load %arg2[%c0_1, %c0_2] : memref<2x64xf32, #tpu.memory_space<vmem>>, vector<2x64xf32>
    %2 = vector.extract_strided_slice %1 {offsets = [0, 0], sizes = [1, 64], strides = [1, 1]} : vector<2x64xf32> to vector<1x64xf32>
    %3 = vector.broadcast %2 : vector<1x64xf32> to vector<2x64xf32>
    %4 = arith.mulf %0, %3 : vector<2x64xf32>
    %5 = vector.extract_strided_slice %1 {offsets = [1, 0], sizes = [1, 64], strides = [1, 1]} : vector<2x64xf32> to vector<1x64xf32>
    %6 = vector.broadcast %5 : vector<1x64xf32> to vector<2x64xf32>
    %7 = arith.addf %4, %6 : vector<2x64xf32>
    %cst = arith.constant 0.000000e+00 : f32
    %8 = vector.broadcast %cst : f32 to vector<2x64xf32>
    %9 = arith.maximumf %7, %8 : vector<2x64xf32>
    %c0_3 = arith.constant 0 : index
    %c0_4 = arith.constant 0 : index
    %10 = vector.load %arg3[%c0_3, %c0_4] : memref<64x16xf32, #tpu.memory_space<vmem>>, vector<64x16xf32>
    %cst_5 = arith.constant dense<0.000000e+00> : vector<2x16xf32>
    %11 = tpu.matmul %9, %10, %cst_5 {dimension_numbers = #tpu.dot_dimension_numbers<[1], [0], [0], [1], [0, 0, 1, 1], [], []>} : vector<2x64xf32>, vector<64x16xf32>, vector<2x16xf32> -> vector<2x16xf32>
    %c0_6 = arith.constant 0 : index
    %c0_7 = arith.constant 0 : index
    %12 = vector.load %arg4[%c0_6, %c0_7] : memref<1x16xf32, #tpu.memory_space<vmem>>, vector<1x16xf32>
    %13 = vector.broadcast %12 : vector<1x16xf32> to vector<2x16xf32>
    %14 = arith.addf %11, %13 : vector<2x16xf32>
    %cst_8 = arith.constant 0.000000e+00 : f32
    %15 = vector.broadcast %cst_8 : f32 to vector<2x16xf32>
    %16 = arith.maximumf %14, %15 : vector<2x16xf32>
    %c0_9 = arith.constant 0 : index
    %c0_10 = arith.constant 0 : index
    %17 = vector.load %arg5[%c0_9, %c0_10] : memref<16x128xf32, #tpu.memory_space<vmem>>, vector<16x128xf32>
    %cst_11 = arith.constant dense<0.000000e+00> : vector<2x128xf32>
    %18 = tpu.matmul %16, %17, %cst_11 {dimension_numbers = #tpu.dot_dimension_numbers<[1], [0], [0], [1], [0, 0, 1, 1], [], []>} : vector<2x16xf32>, vector<16x128xf32>, vector<2x128xf32> -> vector<2x128xf32>
    %c0_12 = arith.constant 0 : index
    %c0_13 = arith.constant 0 : index
    %19 = vector.load %arg6[%c0_12, %c0_13] : memref<1x128xf32, #tpu.memory_space<vmem>>, vector<1x128xf32>
    %20 = vector.broadcast %19 : vector<1x128xf32> to vector<2x128xf32>
    %21 = arith.addf %18, %20 : vector<2x128xf32>
    %cst_14 = arith.constant dense<0xFF800000> : vector<2xf32>
    %22 = vector.multi_reduction <maximumf>, %21, %cst_14 [1] : vector<2x128xf32> to vector<2xf32>
    %23 = vector.shape_cast %22 : vector<2xf32> to vector<2x1xf32>
    %24 = vector.broadcast %23 : vector<2x1xf32> to vector<2x128xf32>
    %25 = arith.subf %21, %24 : vector<2x128xf32>
    %26 = math.exp %25 : vector<2x128xf32>
    %cst_15 = arith.constant dense<0.000000e+00> : vector<2xf32>
    %27 = vector.multi_reduction <add>, %26, %cst_15 [1] : vector<2x128xf32> to vector<2xf32>
    %28 = vector.shape_cast %27 : vector<2xf32> to vector<2x1xf32>
    %29 = tpu.reciprocal %28 : vector<2x1xf32> -> vector<2x1xf32>
    %30 = vector.broadcast %29 : vector<2x1xf32> to vector<2x128xf32>
    %31 = arith.mulf %26, %30 : vector<2x128xf32>
    %c0_16 = arith.constant 0 : index
    %c0_17 = arith.constant 0 : index
    %32 = vector.load %arg7[%c0_16, %c0_17] : memref<2x128xf32, #tpu.memory_space<vmem>>, vector<2x128xf32>
    tpu.vector_store %arg7[%c0_16, %c0_17], %31 {strides = array<i32>} : memref<2x128xf32, #tpu.memory_space<vmem>>, vector<2x128xf32>,
    return
  }
  func.func @transform_0(%arg0: i32) -> (i32, i32) {
    %c0_i32 = arith.constant 0 : i32
    %c0_i32_0 = arith.constant 0 : i32
    return %arg0, %c0_i32 : i32, i32
  }
  func.func @transform_1(%arg0: i32) -> (i32, i32) {
    %c0_i32 = arith.constant 0 : i32
    %c0_i32_0 = arith.constant 0 : i32
    %c0_i32_1 = arith.constant 0 : i32
    return %c0_i32, %c0_i32_0 : i32, i32
  }
  func.func @transform_2(%arg0: i32) -> (i32, i32) {
    %c0_i32 = arith.constant 0 : i32
    %c0_i32_0 = arith.constant 0 : i32
    %c0_i32_1 = arith.constant 0 : i32
    return %c0_i32, %c0_i32_0 : i32, i32
  }
  func.func @transform_3(%arg0: i32) -> (i32, i32) {
    %c0_i32 = arith.constant 0 : i32
    %c0_i32_0 = arith.constant 0 : i32
    %c0_i32_1 = arith.constant 0 : i32
    return %c0_i32, %c0_i32_0 : i32, i32
  }
  func.func @transform_4(%arg0: i32) -> (i32, i32) {
    %c0_i32 = arith.constant 0 : i32
    %c0_i32_0 = arith.constant 0 : i32
    %c0_i32_1 = arith.constant 0 : i32
    return %c0_i32, %c0_i32_0 : i32, i32
  }
  func.func @transform_5(%arg0: i32) -> (i32, i32) {
    %c0_i32 = arith.constant 0 : i32
    %c0_i32_0 = arith.constant 0 : i32
    %c0_i32_1 = arith.constant 0 : i32
    return %c0_i32, %c0_i32_0 : i32, i32
  }
  func.func @transform_6(%arg0: i32) -> (i32, i32) {
    %c0_i32 = arith.constant 0 : i32
    %c0_i32_0 = arith.constant 0 : i32
    return %arg0, %c0_i32 : i32, i32
  }
}

</mosaic_0001>

<llo_original>
// kernel: tpu_custom_call.1
$region0: #{tpu_custom_call.1}
  #allocation0 [shape = 'u32[]', space=smem, size = 0x4, offset = 0x4, fixed_abs, tag = 'smem constant byte address 0x4 - core index']
  #allocation1 [shape = 'u32[144,128]{1,0:T(1,128)}', space=vmem, size = 0x12000, scoped, tag = 'internal scratch']
  %s0 = inlined_call_operand.vmem [shape: f32[2,64], index: 0, kind: input, shape index: {}]
  %s1 = inlined_call_operand.vmem [shape: f32[2,64], index: 1, kind: input, shape index: {}]
  %s2 = inlined_call_operand.vmem [shape: f32[64,16], index: 2, kind: input, shape index: {}]
  %s3 = inlined_call_operand.vmem [shape: f32[1,16], index: 3, kind: input, shape index: {}]
  %s4 = inlined_call_operand.vmem [shape: f32[16,128], index: 4, kind: input, shape index: {}]
  %s5 = inlined_call_operand.vmem [shape: f32[1,128], index: 5, kind: input, shape index: {}]
  %s6 = inlined_call_operand.hbm [shape: f32[2,128], index: 6, kind: output, shape index: {}]
  %s7 = sld [smem:[#allocation0]]
  $region34: #{tpu_custom_call.1} parent=0
    _
  %s9 = ssub.s32 1, %s7
  %s10 = scalar_select 0, %s9, %s7
  $region1: #{tpu_custom_call.1} parent=0
    #allocation2 [shape = 'u8[1024]{0}', space=vmem, size = 0x400, scoped, tag = 'output window, operand 0, single buffered']
    #allocation3 [shape = 's32[1]{0}', space=sflag, size = 0x4, scoped, tag = 'scoped memory for tpu_custom_call.1']
    %11 = vsyncpa [#allocation3], 0
    // Predicated region
    $region2: #{tpu_custom_call.1} parent=1 // pred_check
      _
    $region3: #{tpu_custom_call.1} parent=1 // pred_check_branch
      %13 = sbr.rel (0) target = $region5
    $region4: #{tpu_custom_call.1} parent=1 // pred_region
      _
    $region5: #{tpu_custom_call.1} parent=1 // pred_fallthru
      _
    // Predicated region
    $region6: #{tpu_custom_call.1} parent=1 // pred_check
      _
    $region7: #{tpu_custom_call.1} parent=1 // pred_check_branch
      %15 = sbr.rel (0) target = $region9
    $region8: #{tpu_custom_call.1} parent=1 // pred_region
      _
    $region9: #{tpu_custom_call.1} parent=1 // pred_fallthru
      _
    // Predicated region
    $region10: #{tpu_custom_call.1} parent=1 // pred_check
      _
    $region11: #{tpu_custom_call.1} parent=1 // pred_check_branch
      %17 = sbr.rel (0) target = $region13
    $region12: #{tpu_custom_call.1} parent=1 // pred_region
      _
    $region13: #{tpu_custom_call.1} parent=1 // pred_fallthru
      _
    // Predicated region
    $region14: #{tpu_custom_call.1} parent=1 // pred_check
      _
    $region15: #{tpu_custom_call.1} parent=1 // pred_check_branch
      %19 = sbr.rel (0) target = $region17
    $region16: #{tpu_custom_call.1} parent=1 // pred_region
      _
    $region17: #{tpu_custom_call.1} parent=1 // pred_fallthru
      _
    // Predicated region
    $region18: #{tpu_custom_call.1} parent=1 // pred_check
      _
    $region19: #{tpu_custom_call.1} parent=1 // pred_check_branch
      %21 = sbr.rel (0) target = $region21
    $region20: #{tpu_custom_call.1} parent=1 // pred_region
      _
    $region21: #{tpu_custom_call.1} parent=1 // pred_fallthru
      _
    // Predicated region
    $region22: #{tpu_custom_call.1} parent=1 // pred_check
      _
    $region23: #{tpu_custom_call.1} parent=1 // pred_check_branch
      %23 = sbr.rel (0) target = $region25
    $region24: #{tpu_custom_call.1} parent=1 // pred_region
      _
    $region25: #{tpu_custom_call.1} parent=1 // pred_fallthru
      _
    %v24 = vld [vmem:[%s0] sm:$0x3]
    %v25 = vld [vmem:[%s1] sm:$0x3]
    %v26 = vlaneseq
    %v27 = vshrl.u32 %v26, 7
    %v28 = vsub.s32 0, %v27
    %v29 = vrot.slane %v25, %v28
    %v30 = vmul.f32 %v24, %v29
    %v31 = vlaneseq
    %v32 = vshrl.u32 %v31, 7
    %v33 = vsub.s32 1, %v32
    %v34 = vrot.slane %v25, %v33
    %v35 = vadd.f32 %v30, %v34
    %v36 = vmax.f32 %v35, 0.0
    %v37 = vld [vmem:[%s2] sm:$0xff]
    %v38 = vld [vmem:[%s2 + $0x8] sm:$0xff]
    %v39 = vld [vmem:[%s2 + $0x10] sm:$0xff]
    %v40 = vld [vmem:[%s2 + $0x18] sm:$0xff]
    %v41 = vld [vmem:[%s2 + $0x20] sm:$0xff]
    %v42 = vld [vmem:[%s2 + $0x28] sm:$0xff]
    %v43 = vld [vmem:[%s2 + $0x30] sm:$0xff]
    %v44 = vld [vmem:[%s2 + $0x38] sm:$0xff]
    %v45 = vld [vmem:[%s3] sm:$0x1]
    %v47 = vlaneseq
    %v48 = vshrl.u32 %v47, 7
    %v49 = vsub.s32 0, %v48
    %v50 = vrot.slane %v45, %v49
    %vm52 = vcmask 523264
    %v54 = vsel %vm52, %v36, 0
    %56 = vmatprep.subr.mxu0 0.0
    %57 = vmatpush1.msra.mxu0 0.0
    %58 = vmatprep.subr.mxu0 0.0
    %59 = vmatpush1.msra.mxu0 0.0
    %60 = vmatprep.subr.mxu0 0.0
    %61 = vmatpush1.msra.mxu0 0.0
    %62 = vmatprep.subr.mxu0 0.0
    %63 = vmatpush1.msra.mxu0 0.0
    %64 = vmatprep.subr.mxu0 0.0
    %65 = vmatpush1.msra.mxu0 0.0
    %66 = vmatprep.subr.mxu0 0.0
    %67 = vmatpush1.msra.mxu0 0.0
    %68 = vmatprep.subr.mxu0 0.0
    %69 = vmatpush1.msra.mxu0 0.0
    %70 = vmatprep.subr.mxu0 0.0
    %71 = vmatpush1.msra.mxu0 0.0
    %72 = vmatprep.subr.mxu0 0.0
    %73 = vmatpush1.msra.mxu0 %v44
    %74 = vmatprep.subr.mxu0 0.0
    %75 = vmatpush1.msra.mxu0 %v43
    %76 = vmatprep.subr.mxu0 0.0
    %77 = vmatpush1.msra.mxu0 %v42
    %78 = vmatprep.subr.mxu0 0.0
    %79 = vmatpush1.msra.mxu0 %v41
    %80 = vmatprep.subr.mxu0 0.0
    %81 = vmatpush1.msra.mxu0 %v40
    %82 = vmatprep.subr.mxu0 0.0
    %83 = vmatpush1.msra.mxu0 %v39
    %84 = vmatprep.subr.mxu0 0.0
    %85 = vmatpush1.msra.mxu0 %v38
    %86 = vmatprep.subr.mxu0 0.0
    %87 = vmatpush1.msra.mxu0 %v37
    %88 = vmatprep.subr.mxu0 0.0
    %89 = vmatpush2.msra.mxu0 0.0
    %90 = vmatprep.subr.mxu0 0.0
    %91 = vmatpush2.msra.mxu0 0.0
    %92 = vmatprep.subr.mxu0 0.0
    %93 = vmatpush2.msra.mxu0 0.0
    %94 = vmatprep.subr.mxu0 0.0
    %95 = vmatpush2.msra.mxu0 0.0
    %96 = vmatprep.subr.mxu0 0.0
    %97 = vmatpush2.msra.mxu0 0.0
    %98 = vmatprep.subr.mxu0 0.0
    %99 = vmatpush2.msra.mxu0 0.0
    %100 = vmatprep.subr.mxu0 0.0
    %101 = vmatpush2.msra.mxu0 0.0
    %102 = vmatprep.subr.mxu0 0.0
    %103 = vmatpush2.msra.mxu0 0.0
    %104 = vmatprep.subr.mxu0 0.0
    %105 = vmatpush2.msra.mxu0 0.0
    %106 = vmatprep.subr.mxu0 0.0
    %107 = vmatpush2.msra.mxu0 0.0
    %108 = vmatprep.subr.mxu0 0.0
    %109 = vmatpush2.msra.mxu0 0.0
    %110 = vmatprep.subr.mxu0 0.0
    %111 = vmatpush2.msra.mxu0 0.0
    %112 = vmatprep.subr.mxu0 0.0
    %113 = vmatpush2.msra.mxu0 0.0
    %114 = vmatprep.subr.mxu0 0.0
    %115 = vmatpush2.msra.mxu0 0.0
    %116 = vmatprep.subr.mxu0 0.0
    %117 = vmatpush2.msra.mxu0 0.0
    %118 = vmatprep.subr.mxu0 0.0
    %119 = vmatpush2.msra.mxu0 0.0
    %120 = vmatprep.mubr.f32.mxu0 0.0
    %121 = vmatmul.mubr.f32.gmra.mxu0 %v54
    %v122 = vpop.f32.mrf.mxu0
    %v123 = vadd.f32 %v50, %v122
    %v124 = vpop.f32.mrf.mxu0
    %125 = vdwg.mxu0
    %v126 = vmax.f32 %v123, 0.0
    %v127 = vld [vmem:[%s4] sm:$0xff]
    %v128 = vld [vmem:[%s4 + $0x8] sm:$0xff]
    %v129 = vld [vmem:[%s5] sm:$0x1]
    %v131 = vlaneseq
    %v132 = vshrl.u32 %v131, 7
    %v133 = vsub.s32 0, %v132
    %v134 = vrot.slane %v129, %v133
    %vm136 = vcmask 130048
    %v138 = vsel %vm136, %v126, 0
    %140 = vmatprep.subr.mxu0 0.0
    %141 = vmatpush1.msra.mxu0 0.0
    %142 = vmatprep.subr.mxu0 0.0
    %143 = vmatpush1.msra.mxu0 0.0
    %144 = vmatprep.subr.mxu0 0.0
    %145 = vmatpush1.msra.mxu0 0.0
    %146 = vmatprep.subr.mxu0 0.0
    %147 = vmatpush1.msra.mxu0 0.0
    %148 = vmatprep.subr.mxu0 0.0
    %149 = vmatpush1.msra.mxu0 0.0
    %150 = vmatprep.subr.mxu0 0.0
    %151 = vmatpush1.msra.mxu0 0.0
    %152 = vmatprep.subr.mxu0 0.0
    %153 = vmatpush1.msra.mxu0 0.0
    %154 = vmatprep.subr.mxu0 0.0
    %155 = vmatpush1.msra.mxu0 0.0
    %156 = vmatprep.subr.mxu0 0.0
    %157 = vmatpush1.msra.mxu0 0.0
    %158 = vmatprep.subr.mxu0 0.0
    %159 = vmatpush1.msra.mxu0 0.0
    %160 = vmatprep.subr.mxu0 0.0
    %161 = vmatpush1.msra.mxu0 0.0
    %162 = vmatprep.subr.mxu0 0.0
    %163 = vmatpush1.msra.mxu0 0.0
    %164 = vmatprep.subr.mxu0 0.0
    %165 = vmatpush1.msra.mxu0 0.0
    %166 = vmatprep.subr.mxu0 0.0
    %167 = vmatpush1.msra.mxu0 0.0
    %168 = vmatprep.subr.mxu0 0.0
    %169 = vmatpush1.msra.mxu0 %v128
    %170 = vmatprep.subr.mxu0 0.0
    %171 = vmatpush1.msra.mxu0 %v127
    %172 = vmatprep.subr.mxu0 0.0
    %173 = vmatpush2.msra.mxu0 0.0
    %174 = vmatprep.subr.mxu0 0.0
    %175 = vmatpush2.msra.mxu0 0.0
    %176 = vmatprep.subr.mxu0 0.0
    %177 = vmatpush2.msra.mxu0 0.0
    %178 = vmatprep.subr.mxu0 0.0
    %179 = vmatpush2.msra.mxu0 0.0
    %180 = vmatprep.subr.mxu0 0.0
    %181 = vmatpush2.msra.mxu0 0.0
    %182 = vmatprep.subr.mxu0 0.0
    %183 = vmatpush2.msra.mxu0 0.0
    %184 = vmatprep.subr.mxu0 0.0
    %185 = vmatpush2.msra.mxu0 0.0
    %186 = vmatprep.subr.mxu0 0.0
    %187 = vmatpush2.msra.mxu0 0.0
    %188 = vmatprep.subr.mxu0 0.0
    %189 = vmatpush2.msra.mxu0 0.0
    %190 = vmatprep.subr.mxu0 0.0
    %191 = vmatpush2.msra.mxu0 0.0
    %192 = vmatprep.subr.mxu0 0.0
    %193 = vmatpush2.msra.mxu0 0.0
    %194 = vmatprep.subr.mxu0 0.0
    %195 = vmatpush2.msra.mxu0 0.0
    %196 = vmatprep.subr.mxu0 0.0
    %197 = vmatpush2.msra.mxu0 0.0
    %198 = vmatprep.subr.mxu0 0.0
    %199 = vmatpush2.msra.mxu0 0.0
    %200 = vmatprep.subr.mxu0 0.0
    %201 = vmatpush2.msra.mxu0 0.0
    %202 = vmatprep.subr.mxu0 0.0
    %203 = vmatpush2.msra.mxu0 0.0
    %204 = vmatprep.mubr.f32.mxu0 0.0
    %205 = vmatmul.mubr.f32.gmra.mxu0 %v138
    %v206 = vpop.f32.mrf.mxu0
    %v207 = vadd.f32 %v134, %v206
    %v208 = vpop.f32.mrf.mxu0
    %209 = vdwg.mxu0
    %vm210 = vcmask 1041408
    %v211 = vsel %vm210, %v207, -inf
    %212 = vmax.xlane.f32.xlu0 %v211
    %v213 = vpop.xlane.xlu0 %212
    %v214 = vsub.f32 %v207, %v213
    %v215 = vmul.f32 %v214, 1.442695
    %v216 = vpow.pop %v215
    %v217 = vsel %vm210, %v216, 0.0
    %218 = vadd.xlane.f32.xlu0 %v217
    %v219 = vpop.xlane.xlu0 %218
    %v220 = vrcp.pop %v219
    %v221 = vmul.f32 %v216, %v220
    %222 = vst [vmem:[#allocation2] sm:$0x3] %v221
    // Predicated region
    $region26: #{tpu_custom_call.1} parent=1 // pred_check
      _
    $region27: #{tpu_custom_call.1} parent=1 // pred_check_branch
      %224 = sbr.rel (0) target = $region29
    $region28: #{tpu_custom_call.1} parent=1 // pred_region
      %s226 = ssub.s32 32, 32
      %227 = vsyncadd [#allocation3], %s226
      %s229 = sshll.u32 [#allocation2], 4
      %s230 = int_to_ptr.vmem [resolvable:$true] %s229
      %232 = dma.vmem_to_hbm [thread:$0]  %s230, 32, %s6, [#allocation3]
    $region29: #{tpu_custom_call.1} parent=1 // pred_fallthru
      _
    // Predicated region
    $region30: #{tpu_custom_call.1} parent=1 // pred_check
      _
    $region31: #{tpu_custom_call.1} parent=1 // pred_check_branch
      %234 = sbr.rel (0) target = $region33
    $region32: #{tpu_custom_call.1} parent=1 // pred_region
      %235 = dma.done [#allocation3], 32
    $region33: #{tpu_custom_call.1} parent=1 // pred_fallthru
      _
    %236 = vsyncpa [#allocation3], 1

</llo_original>
